<compile_context>
chip_gen: v7x
topology: tpu7x:2x2x1
jax: 0.10.0
libtpu: 0.0.40
codegen_flags: <defaults>
</compile_context>

<pallas_src>
import numpy as np
import jax
import jax.numpy as jnp
from jax import lax
from jax.experimental import pallas as pl
from jax.experimental.pallas import tpu as pltpu

LANES = 128
_NEG_BIG = -1e30   # pad value for s: sigmoid(-1e30) == 0, log-sigmoid stays finite


def _round_up(a: int, b: int) -> int:
    return ((a + b - 1) // b) * b


def _log_sigmoid(x):
    # Numerically stable log(sigmoid(x)) = min(x, 0) - log(1 + exp(-|x|)).
    # TODO(synk): jnp.log1p would be marginally more accurate / one fewer VPU op;
    # plain log kept for guaranteed Mosaic lowering (error far below 1e-4 tolerance).
    return jnp.minimum(x, 0.0) - jnp.log(1.0 + jnp.exp(-jnp.abs(x)))


# --------------------------- stage 1: streaming counts ---------------------------

def _counts_kernel(x_ref, counts_ref, acc_ref):
    k = pl.program_id(1)                      # T (reduction) axis, innermost

    @pl.when(k == 0)
    def _init():
        acc_ref[...] = jnp.zeros_like(acc_ref)

    v_blk, t_blk = x_ref.shape
    n_chunks = t_blk // LANES

    # vreg-resident lane-partial accumulation of this T block; acc scratch is
    # touched exactly once per grid step (single load-add-store below).
    def body(j, part):
        start = pl.multiple_of(j * LANES, LANES)
        return part + x_ref[:, pl.ds(start, LANES)].astype(jnp.float32)

    part = lax.fori_loop(0, n_chunks, body,
                         jnp.zeros((v_blk, LANES), jnp.float32),
                         unroll=True)
    acc_ref[...] += part

    @pl.when(k == pl.num_programs(1) - 1)
    def _finalize():
        # Single deferred cross-lane (XLU) reduce to per-row token counts.
        counts_ref[...] = jnp.sum(acc_ref[...], axis=1, keepdims=True)


def _token_counts(x: jax.Array, *, v_block: int = 128, t_block: int | None = None,
                  target_block_bytes: int = 2 * 1024 * 1024,
                  max_t_block: int = 8192) -> jax.Array:
    """Row sums of the (V, T) matrix -> (V,) f32 counts, streamed through VMEM."""
    V, T = x.shape
    itemsize = jnp.dtype(x.dtype).itemsize

    # V tiling: whole V if it fits one tile, else tile (multiple of 16 for bf16 packing).
    if V <= v_block:
        v_blk, v_pad = V, V
    else:
        v_blk = _round_up(v_block, 16)
        v_pad = _round_up(V, v_blk)

    # T tiling: blocks sized ~target_block_bytes (>= 2 MiB) to sit near the HBM roofline.
    if t_block is None:
        tb = target_block_bytes // max(1, v_blk * itemsize)
        tb = max(LANES, (tb // LANES) * LANES)
        tb = min(tb, max_t_block)
    else:
        tb = _round_up(t_block, LANES)
    tb = min(tb, _round_up(T, LANES))
    t_pad = _round_up(T, tb)

    if (v_pad, t_pad) != (V, T):
        # Zero rows/cols leave the counts unchanged.
        x = jnp.pad(x, ((0, v_pad - V), (0, t_pad - T)))

    grid = (v_pad // v_blk, t_pad // tb)      # reduction (T) axis last

    # Explicit VMEM budget: 2x double-buffered x block + (v_blk,128) f32 acc + output.
    x_block_bytes = v_blk * tb * itemsize
    vmem_limit = min(64 * 1024 * 1024,
                     max(32 * 1024 * 1024, 3 * x_block_bytes))

    counts = pl.pallas_call(
        _counts_kernel,
        out_shape=jax.ShapeDtypeStruct((v_pad, 1), jnp.float32),
        grid=grid,
        in_specs=[pl.BlockSpec((v_blk, tb), lambda i, k: (i, k))],
        out_specs=pl.BlockSpec((v_blk, 1), lambda i, k: (i, 0)),
        scratch_shapes=[pltpu.VMEM((v_blk, LANES), jnp.float32)],
        compiler_params=pltpu.CompilerParams(
            # V tiles are independent -> "parallel" (v7x 2-TC megacore); T is a reduction.
            dimension_semantics=("parallel", "arbitrary"),
            vmem_limit_bytes=vmem_limit,
        ),
    )(x)
    return counts[:V, 0]


# ------------------------ stage 2: lane-dense loss epilogue ----------------------

def _loss_kernel(c_ref, s_ref, o_ref):
    s = s_ref[...]                               # (ceil(V/128), 128) lane-dense
    sig = jax.nn.sigmoid(s)                      # padded rows contribute exactly 0
    log_z = jnp.log(jnp.sum(sig))
    logp = _log_sigmoid(s) - log_z               # finite even for padded rows
    o_ref[...] = jnp.sum(c_ref[...] * logp).reshape(1, 1)


def _loss_from_counts(counts: jax.Array, s: jax.Array) -> jax.Array:
    """counts: (V,) token counts; s: (V, 1) parameter.  Returns the (1, 1) loss."""
    V = s.shape[0]
    v_pad = _round_up(V, LANES)
    rows = v_pad // LANES
    c = jnp.pad(counts.astype(jnp.float32), (0, v_pad - V)).reshape(rows, LANES)
    s_ld = jnp.pad(jnp.reshape(s, (V,)).astype(jnp.float32), (0, v_pad - V),
                   constant_values=_NEG_BIG).reshape(rows, LANES)
    return pl.pallas_call(
        _loss_kernel,
        out_shape=jax.ShapeDtypeStruct((1, 1), jnp.float32),
        in_specs=[pl.BlockSpec((rows, LANES), lambda: (0, 0)),
                  pl.BlockSpec((rows, LANES), lambda: (0, 0))],
        out_specs=pl.BlockSpec((1, 1), lambda: (0, 0)),
    )(c, s_ld)


# --------------------------------- public API ------------------------------------

def unigram_forward(x: jax.Array, s: jax.Array, *, v_block: int = 128,
                    t_block: int | None = None) -> jax.Array:
    """Forward for dense (V, T) input, matching the PyTorch module's signature."""
    V, T = x.shape
    assert s.shape == (V, 1)
    counts = _token_counts(x, v_block=v_block, t_block=t_block)
    return _loss_from_counts(counts, s)


def unigram_forward_from_counts(counts_row: jax.Array, s: jax.Array) -> jax.Array:
    """Fast path when only per-token counts are available (counts_row: (1, V))."""
    V = s.shape[0]
    assert counts_row.shape == (1, V)
    return _loss_from_counts(jnp.reshape(counts_row, (V,)), s)


# ------------------------------- helpers / reference -----------------------------

def init_unigram_params(V: int) -> jax.Array:
    """Deterministic init matching the PyTorch module: s0 = logit(1/V) for all rows."""
    p0 = np.ones((V, 1), dtype=np.float64) / V
    s0 = np.log(p0) - np.log(1.0 - p0)
    return jnp.asarray(s0.astype(np.float32))


def unigram_reference(x: jax.Array, s: jax.Array) -> jax.Array:
    """Pure-JAX reference mirroring the PyTorch forward exactly."""
    sig = jax.nn.sigmoid(s)
    p = sig / jnp.sum(sig)
    counts = jnp.sum(x, axis=1, keepdims=True)
    return counts.T @ jnp.log(p)


if __name__ == "__main__":
    V = 16      # vocabulary size
    T = 1024    # number of tokens (columns of the one-hot input matrix)

    key = jax.random.PRNGKey(0)
    tokens = jax.random.randint(key, (T,), 0, V)
    # Stream x as bf16 (one-hot values are exact in bf16): halves HBM bytes on the
    # memory-bound dense path; the kernel upcasts to f32 inside the adds.
    x_bf16 = jax.nn.one_hot(tokens, V, dtype=jnp.bfloat16).T      # (V, T)
    x_f32 = x_bf16.astype(jnp.float32)
    s = init_unigram_params(V)

    ref = jax.block_until_ready(unigram_reference(x_f32, s))

    # Dense-input path, f32 x (module parity).
    out_f32 = jax.block_until_ready(unigram_forward(x_f32, s))
    assert out_f32.shape == (1, 1)
    assert np.allclose(np.asarray(out_f32), np.asarray(ref), rtol=1e-4, atol=1e-4), (
        f"f32 dense-path mismatch: kernel={out_f32} ref={ref}"
    )

    # Dense-input path, bf16 x (half the HBM traffic, exact counts).
    out_bf16 = jax.block_until_ready(unigram_forward(x_bf16, s))
    assert np.allclose(np.asarray(out_bf16), np.asarray(ref), rtol=1e-4, atol=1e-4), (
        f"bf16 dense-path mismatch: kernel={out_bf16} ref={ref}"
    )

    # Counts fast path: O(V) bytes instead of O(V*T) bytes of HBM traffic.
    counts_row = jnp.sum(x_f32, axis=1)[None, :]                   # (1, V)
    out_counts = jax.block_until_ready(unigram_forward_from_counts(counts_row, s))
    assert np.allclose(np.asarray(out_counts), np.asarray(ref), rtol=1e-4, atol=1e-4), (
        f"counts-path mismatch: kernel={out_counts} ref={ref}"
    )

    print("KERNEL_OK")
</pallas_src>

<mosaic_0001>
module attributes {stable_mosaic.version = 11 : i64} {
  func.func @_counts_kernel(%arg0: i32, %arg1: i32, %arg2: memref<16x1024xf32, #tpu.memory_space<vmem>>, %arg3: memref<16x1xf32, #tpu.memory_space<vmem>>, %arg4: memref<16x128xf32, #tpu.memory_space<vmem>>) attributes {dimension_semantics = [#tpu.dimension_semantics<parallel>, #tpu.dimension_semantics<arbitrary>], iteration_bounds = array<i64: 1, 1>, scalar_prefetch = 0 : i64, scratch_operands = 1 : i64, tpu.core_type = #tpu.core_type<tc>, window_params = [{transform_indices = @transform_0, window_bounds = array<i64: 16, 1024>}, {transform_indices = @transform_1, window_bounds = array<i64: 16, 1>}]} {
    %c0_i32 = arith.constant 0 : i32
    %0 = arith.cmpi eq, %arg1, %c0_i32 : i32
    %1 = arith.extui %0 : i1 to i32
    %c0_i32_0 = arith.constant 0 : i32
    %2 = arith.cmpi ne, %1, %c0_i32_0 : i32
    scf.if %2 {
      %cst_22 = arith.constant 0.000000e+00 : f32
      %50 = vector.broadcast %cst_22 : f32 to vector<16x128xf32>
      %c0_23 = arith.constant 0 : index
      %c0_24 = arith.constant 0 : index
      %51 = vector.load %arg4[%c0_23, %c0_24] : memref<16x128xf32, #tpu.memory_space<vmem>>, vector<16x128xf32>
      tpu.vector_store %arg4[%c0_23, %c0_24], %50 {strides = array<i32>} : memref<16x128xf32, #tpu.memory_space<vmem>>, vector<16x128xf32>,
    } else {
    }
    %cst = arith.constant 0.000000e+00 : f32
    %3 = vector.broadcast %cst : f32 to vector<16x128xf32>
    %c0_i32_1 = arith.constant 0 : i32
    %c128_i32 = arith.constant 128 : i32
    %4 = arith.muli %c0_i32_1, %c128_i32 : i32
    %5 = tpu.assume_multiple %4, 128 : i32
    %c0 = arith.constant 0 : index
    %6 = arith.index_cast %5 : i32 to index
    %7 = vector.load %arg2[%c0, %6] : memref<16x1024xf32, #tpu.memory_space<vmem>>, vector<16x128xf32>
    %8 = arith.addf %3, %7 : vector<16x128xf32>
    %c1_i32 = arith.constant 1 : i32
    %c128_i32_2 = arith.constant 128 : i32
    %9 = arith.muli %c1_i32, %c128_i32_2 : i32
    %10 = tpu.assume_multiple %9, 128 : i32
    %c0_3 = arith.constant 0 : index
    %11 = arith.index_cast %10 : i32 to index
    %12 = vector.load %arg2[%c0_3, %11] : memref<16x1024xf32, #tpu.memory_space<vmem>>, vector<16x128xf32>
    %13 = arith.addf %8, %12 : vector<16x128xf32>
    %c2_i32 = arith.constant 2 : i32
    %c128_i32_4 = arith.constant 128 : i32
    %14 = arith.muli %c2_i32, %c128_i32_4 : i32
    %15 = tpu.assume_multiple %14, 128 : i32
    %c0_5 = arith.constant 0 : index
    %16 = arith.index_cast %15 : i32 to index
    %17 = vector.load %arg2[%c0_5, %16] : memref<16x1024xf32, #tpu.memory_space<vmem>>, vector<16x128xf32>
    %18 = arith.addf %13, %17 : vector<16x128xf32>
    %c3_i32 = arith.constant 3 : i32
    %c128_i32_6 = arith.constant 128 : i32
    %19 = arith.muli %c3_i32, %c128_i32_6 : i32
    %20 = tpu.assume_multiple %19, 128 : i32
    %c0_7 = arith.constant 0 : index
    %21 = arith.index_cast %20 : i32 to index
    %22 = vector.load %arg2[%c0_7, %21] : memref<16x1024xf32, #tpu.memory_space<vmem>>, vector<16x128xf32>
    %23 = arith.addf %18, %22 : vector<16x128xf32>
    %c4_i32 = arith.constant 4 : i32
    %c128_i32_8 = arith.constant 128 : i32
    %24 = arith.muli %c4_i32, %c128_i32_8 : i32
    %25 = tpu.assume_multiple %24, 128 : i32
    %c0_9 = arith.constant 0 : index
    %26 = arith.index_cast %25 : i32 to index
    %27 = vector.load %arg2[%c0_9, %26] : memref<16x1024xf32, #tpu.memory_space<vmem>>, vector<16x128xf32>
    %28 = arith.addf %23, %27 : vector<16x128xf32>
    %c5_i32 = arith.constant 5 : i32
    %c128_i32_10 = arith.constant 128 : i32
    %29 = arith.muli %c5_i32, %c128_i32_10 : i32
    %30 = tpu.assume_multiple %29, 128 : i32
    %c0_11 = arith.constant 0 : index
    %31 = arith.index_cast %30 : i32 to index
    %32 = vector.load %arg2[%c0_11, %31] : memref<16x1024xf32, #tpu.memory_space<vmem>>, vector<16x128xf32>
    %33 = arith.addf %28, %32 : vector<16x128xf32>
    %c6_i32 = arith.constant 6 : i32
    %c128_i32_12 = arith.constant 128 : i32
    %34 = arith.muli %c6_i32, %c128_i32_12 : i32
    %35 = tpu.assume_multiple %34, 128 : i32
    %c0_13 = arith.constant 0 : index
    %36 = arith.index_cast %35 : i32 to index
    %37 = vector.load %arg2[%c0_13, %36] : memref<16x1024xf32, #tpu.memory_space<vmem>>, vector<16x128xf32>
    %38 = arith.addf %33, %37 : vector<16x128xf32>
    %c7_i32 = arith.constant 7 : i32
    %c128_i32_14 = arith.constant 128 : i32
    %39 = arith.muli %c7_i32, %c128_i32_14 : i32
    %40 = tpu.assume_multiple %39, 128 : i32
    %c0_15 = arith.constant 0 : index
    %41 = arith.index_cast %40 : i32 to index
    %42 = vector.load %arg2[%c0_15, %41] : memref<16x1024xf32, #tpu.memory_space<vmem>>, vector<16x128xf32>
    %43 = arith.addf %38, %42 : vector<16x128xf32>
    %c8_i32 = arith.constant 8 : i32
    %c0_16 = arith.constant 0 : index
    %c0_17 = arith.constant 0 : index
    %44 = vector.load %arg4[%c0_16, %c0_17] : memref<16x128xf32, #tpu.memory_space<vmem>>, vector<16x128xf32>
    %45 = arith.addf %44, %43 : vector<16x128xf32>
    %c0_18 = arith.constant 0 : index
    %c0_19 = arith.constant 0 : index
    %46 = vector.load %arg4[%c0_18, %c0_19] : memref<16x128xf32, #tpu.memory_space<vmem>>, vector<16x128xf32>
    tpu.vector_store %arg4[%c0_18, %c0_19], %45 {strides = array<i32>} : memref<16x128xf32, #tpu.memory_space<vmem>>, vector<16x128xf32>,
    %c0_i32_20 = arith.constant 0 : i32
    %47 = arith.cmpi eq, %arg1, %c0_i32_20 : i32
    %48 = arith.extui %47 : i1 to i32
    %c0_i32_21 = arith.constant 0 : i32
    %49 = arith.cmpi ne, %48, %c0_i32_21 : i32
    scf.if %49 {
      %c0_22 = arith.constant 0 : index
      %c0_23 = arith.constant 0 : index
      %50 = vector.load %arg4[%c0_22, %c0_23] : memref<16x128xf32, #tpu.memory_space<vmem>>, vector<16x128xf32>
      %cst_24 = arith.constant dense<0.000000e+00> : vector<16xf32>
      %51 = vector.multi_reduction <add>, %50, %cst_24 [1] : vector<16x128xf32> to vector<16xf32>
      %52 = vector.shape_cast %51 : vector<16xf32> to vector<16x1xf32>
      %c0_25 = arith.constant 0 : index
      %c0_26 = arith.constant 0 : index
      %53 = vector.load %arg3[%c0_25, %c0_26] : memref<16x1xf32, #tpu.memory_space<vmem>>, vector<16x1xf32>
      tpu.vector_store %arg3[%c0_25, %c0_26], %52 {strides = array<i32>} : memref<16x1xf32, #tpu.memory_space<vmem>>, vector<16x1xf32>,
    } else {
    }
    return
  }
  func.func @transform_0(%arg0: i32, %arg1: i32) -> (i32, i32) {
    %c0_i32 = arith.constant 0 : i32
    return %arg0, %arg1 : i32, i32
  }
  func.func @transform_1(%arg0: i32, %arg1: i32) -> (i32, i32) {
    %c0_i32 = arith.constant 0 : i32
    %c0_i32_0 = arith.constant 0 : i32
    return %arg0, %c0_i32 : i32, i32
  }
}

</mosaic_0001>

<llo_original>
// kernel: tpu_custom_call.1
$region0: #{tpu_custom_call.1}
  #allocation0 [shape = 'u32[]', space=smem, size = 0x4, offset = 0x4, fixed_abs, tag = 'smem constant byte address 0x4 - core index']
  #allocation1 [shape = 'u32[144,128]{1,0:T(1,128)}', space=vmem, size = 0x12000, scoped, tag = 'internal scratch']
  #allocation2 [shape = 'f32[16,128]{1,0:T(8,128)}', space=vmem, size = 0x2000, scoped, tag = 'scratch operand']
  %s0 = inlined_call_operand.hbm [shape: f32[16,1024], index: 0, kind: input, shape index: {}]
  %s1 = inlined_call_operand.vmem [shape: f32[16,1], index: 1, kind: output, shape index: {}]
  %s2 = sld [smem:[#allocation0]]
  $region26: #{tpu_custom_call.1} parent=0
    _
  %s4 = ssub.s32 1, %s2
  %s5 = scalar_select 0, %s4, %s2
  $region1: #{tpu_custom_call.1} parent=0
    #allocation3 [shape = 'u8[65536]{0}', space=vmem, size = 0x10000, scoped, tag = 'input window, operand 0, single buffered']
    #allocation4 [shape = 's32[1]{0}', space=sflag, size = 0x4, scoped, tag = 'scoped memory for tpu_custom_call.1']
    %6 = vsyncpa [#allocation4], 0
    // Predicated region
    $region2: #{tpu_custom_call.1} parent=1 // pred_check
      _
    $region3: #{tpu_custom_call.1} parent=1 // pred_check_branch
      %8 = sbr.rel (0) target = $region5
    $region4: #{tpu_custom_call.1} parent=1 // pred_region
      %s10 = ssub.s32 2048, 2048
      %11 = vsyncadd [#allocation4], %s10
      %s12 = sshll.u32 [#allocation3], 4
      %s13 = int_to_ptr.vmem [resolvable:$true] %s12
      %18 = dma.hbm_to_vmem [thread:$0]  %s0, 2048, %s13, [#allocation4], 1024, 1024, 64
    $region5: #{tpu_custom_call.1} parent=1 // pred_fallthru
      _
    // Predicated region
    $region6: #{tpu_custom_call.1} parent=1 // pred_check
      _
    $region7: #{tpu_custom_call.1} parent=1 // pred_check_branch
      %20 = sbr.rel (0) target = $region9
    $region8: #{tpu_custom_call.1} parent=1 // pred_region
      %21 = dma.done [#allocation4], 2048
    $region9: #{tpu_custom_call.1} parent=1 // pred_fallthru
      _
    %p22 = scmp.eq.s32.totalorder 0, 0
    // Predicated region
    $region10: #{tpu_custom_call.1} parent=1 // pred_check
      %p23 = pneg %p22
    $region11: #{tpu_custom_call.1} parent=1 // pred_check_branch
      %25 = sbr.rel (%p23) target = $region13
    $region12: #{tpu_custom_call.1} parent=1 // pred_region
      %26 = vst [vmem:[#allocation2] sm:$0xff] 0.0
      %27 = vst [vmem:[#allocation2 + $0x8] sm:$0xff] 0.0
    $region13: #{tpu_custom_call.1} parent=1 // pred_fallthru
      _
    %v28 = vld [vmem:[#allocation3] sm:$0xff]
    %v29 = vld [vmem:[#allocation3 + $0x40] sm:$0xff]
    %v30 = vadd.f32 %v28, 0.0
    %v31 = vadd.f32 %v29, 0.0
    %s32 = scalar_lea.vmem [#allocation3], 8
    %v33 = vld [vmem:[%s32] sm:$0xff]
    %v34 = vld [vmem:[%s32 + $0x40] sm:$0xff]
    %v35 = vadd.f32 %v30, %v33
    %v36 = vadd.f32 %v31, %v34
    %s37 = scalar_lea.vmem [#allocation3], 16
    %v38 = vld [vmem:[%s37] sm:$0xff]
    %v39 = vld [vmem:[%s37 + $0x40] sm:$0xff]
    %v40 = vadd.f32 %v35, %v38
    %v41 = vadd.f32 %v36, %v39
    %s42 = scalar_lea.vmem [#allocation3], 24
    %v43 = vld [vmem:[%s42] sm:$0xff]
    %v44 = vld [vmem:[%s42 + $0x40] sm:$0xff]
    %v45 = vadd.f32 %v40, %v43
    %v46 = vadd.f32 %v41, %v44
    %s47 = scalar_lea.vmem [#allocation3], 32
    %v48 = vld [vmem:[%s47] sm:$0xff]
    %v49 = vld [vmem:[%s47 + $0x40] sm:$0xff]
    %v50 = vadd.f32 %v45, %v48
    %v51 = vadd.f32 %v46, %v49
    %s52 = scalar_lea.vmem [#allocation3], 40
    %v53 = vld [vmem:[%s52] sm:$0xff]
    %v54 = vld [vmem:[%s52 + $0x40] sm:$0xff]
    %v55 = vadd.f32 %v50, %v53
    %v56 = vadd.f32 %v51, %v54
    %s57 = scalar_lea.vmem [#allocation3], 48
    %v58 = vld [vmem:[%s57] sm:$0xff]
    %v59 = vld [vmem:[%s57 + $0x40] sm:$0xff]
    %v60 = vadd.f32 %v55, %v58
    %v61 = vadd.f32 %v56, %v59
    %s62 = scalar_lea.vmem [#allocation3], 56
    %v63 = vld [vmem:[%s62] sm:$0xff]
    %v64 = vld [vmem:[%s62 + $0x40] sm:$0xff]
    %v65 = vadd.f32 %v60, %v63
    %v66 = vadd.f32 %v61, %v64
    %v67 = vld [vmem:[#allocation2] sm:$0xff]
    %v68 = vld [vmem:[#allocation2 + $0x8] sm:$0xff]
    %v69 = vadd.f32 %v67, %v65
    %v70 = vadd.f32 %v68, %v66
    %71 = vst [vmem:[#allocation2] sm:$0xff] %v69
    %72 = vst [vmem:[#allocation2 + $0x8] sm:$0xff] %v70
    // Predicated region
    $region14: #{tpu_custom_call.1} parent=1 // pred_check
      %p73 = pneg %p22
    $region15: #{tpu_custom_call.1} parent=1 // pred_check_branch
      %75 = sbr.rel (%p73) target = $region17
    $region16: #{tpu_custom_call.1} parent=1 // pred_region
      %v76 = vld [vmem:[#allocation2] sm:$0xff]
      %v77 = vld [vmem:[#allocation2 + $0x8] sm:$0xff]
      %78 = vadd.xlane.f32.xlu0 %v76
      %v79 = vpop.xlane.xlu0 %78
      %80 = vadd.xlane.f32.xlu0 %v77
      %v81 = vpop.xlane.xlu0 %80
      %vm82 = vcmask 7168
      %83 = vst.msk [vmem:[%s1] sm:$0xff] %vm82, %v79
      %84 = vst.msk [vmem:[%s1 + $0x8] sm:$0xff] %vm82, %v81
    $region17: #{tpu_custom_call.1} parent=1 // pred_fallthru
      _
    // Predicated region
    $region18: #{tpu_custom_call.1} parent=1 // pred_check
      _
    $region19: #{tpu_custom_call.1} parent=1 // pred_check_branch
      %86 = sbr.rel (0) target = $region21
    $region20: #{tpu_custom_call.1} parent=1 // pred_region
      _
    $region21: #{tpu_custom_call.1} parent=1 // pred_fallthru
      _
    // Predicated region
    $region22: #{tpu_custom_call.1} parent=1 // pred_check
      _
    $region23: #{tpu_custom_call.1} parent=1 // pred_check_branch
      %88 = sbr.rel (0) target = $region25
    $region24: #{tpu_custom_call.1} parent=1 // pred_region
      _
    $region25: #{tpu_custom_call.1} parent=1 // pred_fallthru
      _
    %89 = vsyncpa [#allocation4], 1

</llo_original>
